<compile_context>
chip_gen: v5e
topology: v5e:2x2
jax: 0.10.0
libtpu: 0.0.40
codegen_flags: <defaults>
</compile_context>

<pallas_src>
import math
from functools import partial

import jax
import jax.numpy as jnp
from jax import lax
from jax.experimental import pallas as pl
from jax.experimental.pallas import tpu as pltpu


# --------------------------------------------------------------- tile picker --
def _pick_tile(dim, pref, align):
    """Largest tile <= pref that divides dim (multiple of align when possible)."""
    if dim <= pref:
        return dim
    t = (pref // align) * align
    while t >= align:
        if dim % t == 0:
            return t
        t -= align
    return dim


# ------------------------------------------------------------------- linears --
def _matmul_kernel(x_ref, w_ref, o_ref, acc_ref):
    @pl.when(pl.program_id(2) == 0)
    def _():
        acc_ref[...] = jnp.zeros_like(acc_ref)

    acc_ref[...] += jnp.dot(x_ref[...], w_ref[...],
                            preferred_element_type=jnp.float32)

    @pl.when(pl.program_id(2) == pl.num_programs(2) - 1)
    def _():
        o_ref[...] = acc_ref[...].astype(o_ref.dtype)


def linear_bf16(x, w_t, *, tm=512, tn=512, tk=1024):
    """x: (M, K) bf16, w_t: (K, N) bf16 -> (M, N) bf16 (no bias, config.bias=False)."""
    M, K = x.shape
    K2, N = w_t.shape
    assert K == K2
    tm = _pick_tile(M, tm, 8)
    tn = _pick_tile(N, tn, 128)
    tk = _pick_tile(K, tk, 128)
    grid = (M // tm, N // tn, K // tk)
    return pl.pallas_call(
        _matmul_kernel,
        out_shape=jax.ShapeDtypeStruct((M, N), jnp.bfloat16),
        grid_spec=pltpu.PrefetchScalarGridSpec(
            num_scalar_prefetch=0,
            grid=grid,
            in_specs=[
                pl.BlockSpec((tm, tk), lambda i, j, k: (i, k)),
                pl.BlockSpec((tk, tn), lambda i, j, k: (k, j)),
            ],
            out_specs=pl.BlockSpec((tm, tn), lambda i, j, k: (i, j)),
            scratch_shapes=[pltpu.VMEM((tm, tn), jnp.float32)],
        ),
        compiler_params=pltpu.CompilerParams(
            dimension_semantics=("parallel", "parallel", "arbitrary"),
            vmem_limit_bytes=32 * 1024 * 1024),
    )(x, w_t)


# ----------------------------------------------------------------- attention --
def _flash_attn_proj_kernel(q_ref, kv_ref, wproj_ref, *rest,
                            n_head, head_dim, scale, has_v1):
    # q_ref:     (1, tq,  3C) bf16  -- q-tile view of the fused qkv slab
    # kv_ref:    (1, tkv, 3C) bf16  -- kv-tile view of the same slab
    # wproj_ref: (C, C)       bf16  -- c_proj weight (in, out), resident in VMEM
    # v1_ref:    (1, H, tkv, D) bf16 (optional, native torch layout)
    # o_ref:     (1, tq, C)   bf16  -- already projected (c_proj fused)
    # scratch:   m (H,tq,1) f32, l (H,tq,1) f32, acc (H,tq,D) f32
    if has_v1:
        v1_ref, o_ref, m_sc, l_sc, acc_sc = rest
    else:
        o_ref, m_sc, l_sc, acc_sc = rest

    H, D = n_head, head_dim
    C = H * D
    tq = q_ref.shape[1]
    tkv = kv_ref.shape[1]

    qi = pl.program_id(1)
    ki = pl.program_id(2)
    nkv = pl.num_programs(2)

    @pl.when(ki == 0)
    def _init():
        m_sc[...] = jnp.full_like(m_sc, -jnp.inf)
        l_sc[...] = jnp.zeros_like(l_sc)
        acc_sc[...] = jnp.zeros_like(acc_sc)

    q_start = qi * tq
    kv_start = ki * tkv
    # Skip kv tiles that lie entirely above the causal diagonal for this q tile.
    not_all_masked = kv_start <= q_start + (tq - 1)

    @pl.when(not_all_masked)
    def _compute():
        # Causal mask in absolute coordinates, hoisted over heads.
        # (ALiBi bias dropped: it is identically zero on every kept position.)
        row = q_start + lax.broadcasted_iota(jnp.int32, (tq, tkv), 0)
        col = kv_start + lax.broadcasted_iota(jnp.int32, (tq, tkv), 1)
        keep = col <= row
        neg_inf = jnp.float32(-jnp.inf)
        scale_b = jnp.bfloat16(scale)
        half = jnp.bfloat16(0.5)

        for h in range(H):                           # static unroll over heads
            # Fold 1/sqrt(D) into q (T*D work instead of T^2).
            qh = q_ref[0, :, h * D:(h + 1) * D] * scale_b              # (tq, D)
            kh = kv_ref[0, :, C + h * D:C + (h + 1) * D]               # (tkv, D)
            vh = kv_ref[0, :, 2 * C + h * D:2 * C + (h + 1) * D]       # (tkv, D)
            if has_v1:
                vh = (vh + v1_ref[0, h]) * half       # value-residual mix (one mul)

            # bf16-in / f32-acc MXU matmul contracting on D (no transpose).
            s = lax.dot_general(qh, kh, (((1,), (1,)), ((), ())),
                                preferred_element_type=jnp.float32)
            s = jnp.where(keep, s, neg_inf)

            # Online softmax update (running max / sum / accumulator per head).
            m_prev = m_sc[h]
            m_new = jnp.maximum(m_prev, jnp.max(s, axis=-1, keepdims=True))
            alpha = jnp.exp(m_prev - m_new)
            p = jnp.exp(s - m_new)
            l_sc[h] = alpha * l_sc[h] + jnp.sum(p, axis=-1, keepdims=True)
            acc_sc[h] = alpha * acc_sc[h] + jnp.dot(
                p.astype(jnp.bfloat16), vh, preferred_element_type=jnp.float32)
            m_sc[h] = m_new

    @pl.when(ki == nkv - 1)
    def _finalize():
        # Fused c_proj: y @ W == sum_h y_h @ W[h*D:(h+1)*D, :].
        # Streams per-head results (no concat, no narrow masked stores) and
        # writes one lane-dense (tq, C) slab.
        out = jnp.zeros((tq, C), jnp.float32)
        for h in range(H):
            inv_l = pl.reciprocal(l_sc[h], approx=True)
            y_h = (acc_sc[h] * inv_l).astype(jnp.bfloat16)             # (tq, D)
            out = out + jnp.dot(y_h, wproj_ref[h * D:(h + 1) * D, :],
                                preferred_element_type=jnp.float32)
        o_ref[0] = out.astype(o_ref.dtype)


def alibi_attention(x, params, n_head, v1=None, *, tq=256, tkv=256):
    """Forward pass matching ALiBiAttention.forward (eval mode: dropout = identity).

    x: (B, T, C) float; v1 (optional): (B, H, T, D) in the torch layout.
    Returns (B, T, C) bf16 (c_proj fused into the attention kernel).
    """
    B, T, C = x.shape
    H = n_head
    D = C // H
    assert C % H == 0

    x16 = x.astype(jnp.bfloat16)
    w_attn_t = params["c_attn_w"].T.astype(jnp.bfloat16)   # (C, 3C)
    w_proj_t = params["c_proj_w"].T.astype(jnp.bfloat16)   # (C, C)

    # fused qkv projection -> (B, T, 3C); no jnp.split / head transposes in XLA.
    qkv = linear_bf16(x16.reshape(B * T, C), w_attn_t).reshape(B, T, 3 * C)

    tq = _pick_tile(T, tq, 8)
    tkv = _pick_tile(T, tkv, 8)
    nq, nkv = T // tq, T // tkv

    scale = 1.0 / math.sqrt(D)
    has_v1 = v1 is not None

    inputs = [qkv, qkv, w_proj_t]
    in_specs = [
        pl.BlockSpec((1, tq, 3 * C), lambda b, qi, ki: (b, qi, 0)),    # q tile
        pl.BlockSpec((1, tkv, 3 * C), lambda b, qi, ki: (b, ki, 0)),   # kv tile
        pl.BlockSpec((C, C), lambda b, qi, ki: (0, 0)),                # w_proj
    ]
    if has_v1:
        # Consume v1 in its native (B, H, T, D) layout -> no wrapper transpose.
        inputs.append(v1.astype(jnp.bfloat16))
        in_specs.append(pl.BlockSpec((1, H, tkv, D), lambda b, qi, ki: (b, 0, ki, 0)))

    out = pl.pallas_call(
        partial(_flash_attn_proj_kernel, n_head=H, head_dim=D, scale=scale,
                has_v1=has_v1),
        out_shape=jax.ShapeDtypeStruct((B, T, C), jnp.bfloat16),
        grid_spec=pltpu.PrefetchScalarGridSpec(
            num_scalar_prefetch=0,
            grid=(B, nq, nkv),
            in_specs=in_specs,
            out_specs=pl.BlockSpec((1, tq, C), lambda b, qi, ki: (b, qi, 0)),
            scratch_shapes=[
                pltpu.VMEM((H, tq, 1), jnp.float32),   # running max
                pltpu.VMEM((H, tq, 1), jnp.float32),   # running sum
                pltpu.VMEM((H, tq, D), jnp.float32),   # running output acc
            ],
        ),
        compiler_params=pltpu.CompilerParams(
            dimension_semantics=("parallel", "parallel", "arbitrary"),
            vmem_limit_bytes=32 * 1024 * 1024),
    )(*inputs)
    return out


# --------------------------------------------------------------- param setup --
def get_alibi_slope(num_heads):
    x = (2 ** 8) ** (1 / num_heads)
    vals = [1 / x ** (i + 1) for i in range(num_heads)]
    # torch buffer is bf16; keep bf16-rounded values (unused by the kernel: the
    # bias is a no-op on the forward output, see reference_forward).
    return jnp.asarray(vals, dtype=jnp.bfloat16).astype(jnp.float32)


def init_params(key, n_embd, n_head):
    k1, k2 = jax.random.split(key)
    c_attn_w = (jax.random.normal(k1, (3 * n_embd, n_embd), jnp.float32) * 0.02).astype(jnp.bfloat16)
    c_proj_w = (jax.random.normal(k2, (n_embd, n_embd), jnp.float32) * 0.02).astype(jnp.bfloat16)
    return {
        "c_attn_w": c_attn_w,           # (3C, C), torch Linear weight layout (out, in)
        "c_proj_w": c_proj_w,           # (C, C)
        "alibi_slope": get_alibi_slope(n_head),  # (H,)
    }


# ----------------------------------------------------------- pure-JAX reference
def reference_forward(x, params, n_head, v1=None):
    """Torch-faithful reference (keeps the ALiBi bias + exact softmax)."""
    B, T, C = x.shape
    H, D = n_head, C // n_head
    x16 = x.astype(jnp.bfloat16)
    qkv = jnp.dot(x16, params["c_attn_w"].T.astype(jnp.bfloat16),
                  preferred_element_type=jnp.float32).astype(jnp.bfloat16)
    q, k, v = jnp.split(qkv, 3, axis=2)
    rs = lambda t: t.reshape(B, T, H, D).transpose(0, 2, 1, 3)
    q, k, v = rs(q), rs(k), rs(v)
    if v1 is None:
        v1 = v
    v = (jnp.bfloat16(0.5) * v + jnp.bfloat16(0.5) * v1.astype(jnp.bfloat16)).astype(jnp.bfloat16)
    scale = 1.0 / math.sqrt(D)
    att = jnp.einsum("bhtd,bhsd->bhts", q.astype(jnp.float32),
                     k.astype(jnp.float32)) * scale
    col = jnp.arange(T, dtype=jnp.float32)[None, :]
    row = jnp.arange(T, dtype=jnp.float32)[:, None]
    att = att + jnp.maximum(col - row, 0.0)[None, None] * params["alibi_slope"][None, :, None, None]
    att = jnp.where((col <= row)[None, None], att, -jnp.inf)
    att16 = att.astype(jnp.bfloat16).astype(jnp.float32)
    p = jax.nn.softmax(att16, axis=-1).astype(jnp.bfloat16)
    y = jnp.einsum("bhts,bhsd->bhtd", p.astype(jnp.float32),
                   v.astype(jnp.float32)).astype(jnp.bfloat16)
    y = y.transpose(0, 2, 1, 3).reshape(B, T, C)
    out = jnp.dot(y, params["c_proj_w"].T.astype(jnp.bfloat16),
                  preferred_element_type=jnp.float32).astype(jnp.bfloat16)
    return out


def _check(out, ref, tag, tol=5e-2):
    assert jnp.isfinite(out.astype(jnp.float32)).all(), f"non-finite output ({tag})"
    diff = float(jnp.max(jnp.abs(out.astype(jnp.float32) - ref.astype(jnp.float32))))
    assert diff < tol, f"mismatch vs reference ({tag}): {diff}"


# ---------------------------------------------------------------------- main --
if __name__ == "__main__":
    # ---- small demo shapes (single tile per axis) ----
    B, T, n_head, n_embd = 2, 8, 4, 32   # head_dim = 8
    key = jax.random.PRNGKey(0)
    kp, kx, kv, kp2, kx2, kv2 = jax.random.split(key, 6)
    params = init_params(kp, n_embd, n_head)
    x = jax.random.normal(kx, (B, T, n_embd), jnp.float32)

    out = jax.block_until_ready(alibi_attention(x, params, n_head))
    assert out.shape == (B, T, n_embd) and out.dtype == jnp.bfloat16
    ref = jax.block_until_ready(reference_forward(x, params, n_head))
    _check(out, ref, "small, v1=None")

    D = n_embd // n_head
    v1 = (jax.random.normal(kv, (B, n_head, T, D), jnp.float32) * 0.1).astype(jnp.bfloat16)
    out2 = jax.block_until_ready(alibi_attention(x, params, n_head, v1=v1))
    ref2 = jax.block_until_ready(reference_forward(x, params, n_head, v1=v1))
    _check(out2, ref2, "small, v1 given")

    # ---- larger shapes exercising the tiled flash path (multi q/kv tiles,
    #      online softmax accumulation, causal tile skipping) ----
    B2, T2, H2, C2 = 1, 256, 4, 256      # head_dim = 64
    params2 = init_params(kp2, C2, H2)
    x2 = jax.random.normal(kx2, (B2, T2, C2), jnp.float32)
    v1b = (jax.random.normal(kv2, (B2, H2, T2, C2 // H2), jnp.float32) * 0.1).astype(jnp.bfloat16)
    out3 = jax.block_until_ready(alibi_attention(x2, params2, H2, v1=v1b, tq=128, tkv=128))
    ref3 = jax.block_until_ready(reference_forward(x2, params2, H2, v1=v1b))
    _check(out3, ref3, "tiled flash path")

    print("KERNEL_OK")
</pallas_src>

<mosaic_0001>
module attributes {stable_mosaic.version = 11 : i64} {
  func.func @_matmul_kernel(%arg0: i32, %arg1: i32, %arg2: i32, %arg3: memref<16x32xbf16, #tpu.memory_space<vmem>>, %arg4: memref<32x96xbf16, #tpu.memory_space<vmem>>, %arg5: memref<16x96xbf16, #tpu.memory_space<vmem>>, %arg6: memref<16x96xf32, #tpu.memory_space<vmem>>) attributes {dimension_semantics = [#tpu.dimension_semantics<parallel>, #tpu.dimension_semantics<parallel>, #tpu.dimension_semantics<arbitrary>], iteration_bounds = array<i64: 1, 1, 1>, scalar_prefetch = 0 : i64, scratch_operands = 1 : i64, tpu.core_type = #tpu.core_type<tc>, window_params = [{transform_indices = @transform_0, window_bounds = array<i64: 16, 32>}, {transform_indices = @transform_1, window_bounds = array<i64: 32, 96>}, {transform_indices = @transform_2, window_bounds = array<i64: 16, 96>}]} {
    %c0_i32 = arith.constant 0 : i32
    %0 = arith.cmpi eq, %arg2, %c0_i32 : i32
    %1 = arith.extui %0 : i1 to i32
    %c0_i32_0 = arith.constant 0 : i32
    %2 = arith.cmpi ne, %1, %c0_i32_0 : i32
    scf.if %2 {
      %cst_10 = arith.constant 0.000000e+00 : f32
      %12 = vector.broadcast %cst_10 : f32 to vector<16x96xf32>
      %c0_11 = arith.constant 0 : index
      %c0_12 = arith.constant 0 : index
      %13 = vector.load %arg6[%c0_11, %c0_12] : memref<16x96xf32, #tpu.memory_space<vmem>>, vector<16x96xf32>
      tpu.vector_store %arg6[%c0_11, %c0_12], %12 {strides = array<i32>} : memref<16x96xf32, #tpu.memory_space<vmem>>, vector<16x96xf32>,
    } else {
    }
    %c0 = arith.constant 0 : index
    %c0_1 = arith.constant 0 : index
    %3 = vector.load %arg6[%c0, %c0_1] : memref<16x96xf32, #tpu.memory_space<vmem>>, vector<16x96xf32>
    %c0_2 = arith.constant 0 : index
    %c0_3 = arith.constant 0 : index
    %4 = vector.load %arg3[%c0_2, %c0_3] : memref<16x32xbf16, #tpu.memory_space<vmem>>, vector<16x32xbf16>
    %c0_4 = arith.constant 0 : index
    %c0_5 = arith.constant 0 : index
    %5 = vector.load %arg4[%c0_4, %c0_5] : memref<32x96xbf16, #tpu.memory_space<vmem>>, vector<32x96xbf16>
    %cst = arith.constant dense<0.000000e+00> : vector<16x96xf32>
    %6 = tpu.matmul %4, %5, %cst {dimension_numbers = #tpu.dot_dimension_numbers<[1], [0], [0], [1], [0, 0, 1, 1], [], []>} : vector<16x32xbf16>, vector<32x96xbf16>, vector<16x96xf32> -> vector<16x96xf32>
    %7 = arith.addf %3, %6 : vector<16x96xf32>
    %c0_6 = arith.constant 0 : index
    %c0_7 = arith.constant 0 : index
    %8 = vector.load %arg6[%c0_6, %c0_7] : memref<16x96xf32, #tpu.memory_space<vmem>>, vector<16x96xf32>
    tpu.vector_store %arg6[%c0_6, %c0_7], %7 {strides = array<i32>} : memref<16x96xf32, #tpu.memory_space<vmem>>, vector<16x96xf32>,
    %c0_i32_8 = arith.constant 0 : i32
    %9 = arith.cmpi eq, %arg2, %c0_i32_8 : i32
    %10 = arith.extui %9 : i1 to i32
    %c0_i32_9 = arith.constant 0 : i32
    %11 = arith.cmpi ne, %10, %c0_i32_9 : i32
    scf.if %11 {
      %c0_10 = arith.constant 0 : index
      %c0_11 = arith.constant 0 : index
      %12 = vector.load %arg6[%c0_10, %c0_11] : memref<16x96xf32, #tpu.memory_space<vmem>>, vector<16x96xf32>
      %13 = arith.truncf %12 : vector<16x96xf32> to vector<16x96xbf16>
      %c0_12 = arith.constant 0 : index
      %c0_13 = arith.constant 0 : index
      %14 = vector.load %arg5[%c0_12, %c0_13] : memref<16x96xbf16, #tpu.memory_space<vmem>>, vector<16x96xbf16>
      tpu.vector_store %arg5[%c0_12, %c0_13], %13 {strides = array<i32>} : memref<16x96xbf16, #tpu.memory_space<vmem>>, vector<16x96xbf16>,
    } else {
    }
    return
  }
  func.func @transform_0(%arg0: i32, %arg1: i32, %arg2: i32) -> (i32, i32) {
    %c0_i32 = arith.constant 0 : i32
    return %arg0, %arg2 : i32, i32
  }
  func.func @transform_1(%arg0: i32, %arg1: i32, %arg2: i32) -> (i32, i32) {
    %c0_i32 = arith.constant 0 : i32
    return %arg2, %arg1 : i32, i32
  }
  func.func @transform_2(%arg0: i32, %arg1: i32, %arg2: i32) -> (i32, i32) {
    %c0_i32 = arith.constant 0 : i32
    return %arg0, %arg1 : i32, i32
  }
}

</mosaic_0001>

<llo_original>
// kernel: tpu_custom_call.1
$region0: #{tpu_custom_call.1}
  #allocation0 [shape = 'u32[]', space=smem, size = 0x4, offset = 0x4, fixed_abs, tag = 'smem constant byte address 0x4 - core index']
  #allocation1 [shape = 'u32[72,128]{1,0:T(1,128)}', space=vmem, size = 0x9000, scoped, tag = 'internal scratch']
  #allocation2 [shape = 'f32[16,96]{1,0:T(8,128)}', space=vmem, size = 0x2000, scoped, tag = 'scratch operand']
  %s0 = inlined_call_operand.hbm [shape: bf16[16,32], index: 0, kind: input, shape index: {}]
  %s1 = inlined_call_operand.hbm [shape: bf16[32,96], index: 1, kind: input, shape index: {}]
  %s2 = inlined_call_operand.hbm [shape: bf16[16,96], index: 2, kind: output, shape index: {}]
  %s3 = sld [smem:[#allocation0]]
  $region34: #{tpu_custom_call.1} parent=0
    _
  %s5 = ssub.s32 1, %s3
  %s6 = scalar_select 0, %s5, %s3
  $region1: #{tpu_custom_call.1} parent=0
    #allocation3 [shape = 'u8[4096]{0}', space=vmem, size = 0x1000, scoped, tag = 'input window, operand 0, single buffered']
    #allocation4 [shape = 's32[1]{0}', space=sflag, size = 0x4, scoped, tag = 'scoped memory for tpu_custom_call.1']
    #allocation5 [shape = 's32[1]{0}', space=sflag, size = 0x4, scoped, tag = 'scoped memory for tpu_custom_call.1']
    #allocation6 [shape = 'u8[8192]{0}', space=vmem, size = 0x2000, scoped, tag = 'input window, operand 1, single buffered']
    #allocation7 [shape = 's32[1]{0}', space=sflag, size = 0x4, scoped, tag = 'scoped memory for tpu_custom_call.1']
    #allocation8 [shape = 'u8[4096]{0}', space=vmem, size = 0x1000, scoped, tag = 'output window, operand 0, single buffered']
    %7 = vsyncpa [#allocation4], 0
    %8 = vsyncpa [#allocation7], 0
    %9 = vsyncpa [#allocation5], 0
    // Predicated region
    $region2: #{tpu_custom_call.1} parent=1 // pred_check
      _
    $region3: #{tpu_custom_call.1} parent=1 // pred_check_branch
      %11 = sbr.rel (0) target = $region5
    $region4: #{tpu_custom_call.1} parent=1 // pred_region
      %13 = vsyncadd [#allocation4], 0
      %s14 = sshll.u32 %s0, 4
      %s15 = int_to_ptr.hbm [resolvable:$true] %s14
      %s16 = sshll.u32 [#allocation3], 4
      %s17 = int_to_ptr.vmem [resolvable:$true] %s16
      %22 = dma.hbm_to_vmem [thread:$0]  %s15, 128, %s17, [#allocation4], 64, 64, 4
    $region5: #{tpu_custom_call.1} parent=1 // pred_fallthru
      _
    // Predicated region
    $region6: #{tpu_custom_call.1} parent=1 // pred_check
      _
    $region7: #{tpu_custom_call.1} parent=1 // pred_check_branch
      %24 = sbr.rel (0) target = $region9
    $region8: #{tpu_custom_call.1} parent=1 // pred_region
      %26 = vsyncadd [#allocation7], 0
      %s27 = sshll.u32 %s1, 4
      %s28 = int_to_ptr.hbm [resolvable:$true] %s27
      %s29 = sshll.u32 [#allocation6], 4
      %s30 = int_to_ptr.vmem [resolvable:$true] %s29
      %35 = dma.hbm_to_vmem [thread:$0]  %s28, 256, %s30, [#allocation7], 64, 64, 4
    $region9: #{tpu_custom_call.1} parent=1 // pred_fallthru
      _
    // Predicated region
    $region10: #{tpu_custom_call.1} parent=1 // pred_check
      _
    $region11: #{tpu_custom_call.1} parent=1 // pred_check_branch
      %37 = sbr.rel (0) target = $region13
    $region12: #{tpu_custom_call.1} parent=1 // pred_region
      %39 = dma.done [#allocation4], 128
    $region13: #{tpu_custom_call.1} parent=1 // pred_fallthru
      _
    // Predicated region
    $region14: #{tpu_custom_call.1} parent=1 // pred_check
      _
    $region15: #{tpu_custom_call.1} parent=1 // pred_check_branch
      %41 = sbr.rel (0) target = $region17
    $region16: #{tpu_custom_call.1} parent=1 // pred_region
      %43 = dma.done [#allocation7], 256
    $region17: #{tpu_custom_call.1} parent=1 // pred_fallthru
      _
    %p45 = scmp.eq.s32.totalorder 0, 0
    // Predicated region
    $region18: #{tpu_custom_call.1} parent=1 // pred_check
      %p46 = pneg %p45
    $region19: #{tpu_custom_call.1} parent=1 // pred_check_branch
      %48 = sbr.rel (%p46) target = $region21
    $region20: #{tpu_custom_call.1} parent=1 // pred_region
      %vm49 = vcmask 785408
      %50 = vst.msk [vmem:[#allocation2] sm:$0xff] %vm49, 0.0
      %51 = vst.msk [vmem:[#allocation2 + $0x8] sm:$0xff] %vm49, 0.0
    $region21: #{tpu_custom_call.1} parent=1 // pred_fallthru
      _
    %v52 = vld [vmem:[#allocation2] sm:$0xff]
    %v53 = vld [vmem:[#allocation2 + $0x8] sm:$0xff]
    %v54 = vld [vmem:[#allocation3] sm:$0xf]
    %v55 = vld [vmem:[#allocation3 + $0x4] sm:$0xf]
    %v56 = vld [vmem:[#allocation6] sm:$0xf]
    %v57 = vld [vmem:[#allocation6 + $0x4] sm:$0xf]
    %v58 = vld [vmem:[#allocation6 + $0x8] sm:$0xf]
    %v59 = vld [vmem:[#allocation6 + $0xc] sm:$0xf]
    %v62 = vunpack.c.l.b16 %v54
    %v63 = vunpack.c.l.b16 %v55
    %v64 = vpack.c.b16 %v63, %v62
    %v69 = vunpack.c.l.b16 %v56
    %v70 = vunpack.c.l.b16 %v57
    %v71 = vunpack.c.l.b16 %v58
    %v72 = vunpack.c.l.b16 %v59
    %v73 = vpack.c.b16 %v70, %v69
    %v74 = vpack.c.b16 %v72, %v71
    %vm77 = vcmask 261120
    %v79 = vsel %vm77, %v64, 0
    %81 = vmatpush.bf16.msra.mxu0 0
    %82 = vmatpush.bf16.msra.mxu0 0
    %83 = vmatpush.bf16.msra.mxu0 0
    %84 = vmatpush.bf16.msra.mxu0 0
    %85 = vmatpush.bf16.msra.mxu0 0
    %86 = vmatpush.bf16.msra.mxu0 0
    %87 = vmatpush.bf16.msra.mxu0 %v74
    %88 = vmatpush.bf16.msra.mxu0 %v73
    %89 = vmatmul.bf16.gmra.mxu0 %v79
    %v90 = vpop.f32.mrf.mxu0
    %v91 = vadd.f32 0.0, %v90
    %v92 = vpop.f32.mrf.mxu0
    %v93 = vadd.f32 0.0, %v92
    %94 = vdwg.mxu0
    %v95 = vadd.f32 %v52, %v91
    %v96 = vadd.f32 %v53, %v93
    %vm97 = vcmask 785408
    %98 = vst.msk [vmem:[#allocation2] sm:$0xff] %vm97, %v95
    %99 = vst.msk [vmem:[#allocation2 + $0x8] sm:$0xff] %vm97, %v96
    // Predicated region
    $region22: #{tpu_custom_call.1} parent=1 // pred_check
      %p100 = pneg %p45
    $region23: #{tpu_custom_call.1} parent=1 // pred_check_branch
      %102 = sbr.rel (%p100) target = $region25
    $region24: #{tpu_custom_call.1} parent=1 // pred_region
      %v103 = vld [vmem:[#allocation2] sm:$0xff]
      %v104 = vld [vmem:[#allocation2 + $0x8] sm:$0xff]
      %v105 = vpack.c.bf16 %v103, %v103
      %v106 = vpack.c.bf16 %v104, %v104
      %vm107 = vcmask 781312
      %108 = vst.msk [vmem:[#allocation8] sm:$0xf] %vm107, %v105
      %109 = vst.msk [vmem:[#allocation8 + $0x4] sm:$0xf] %vm107, %v106
    $region25: #{tpu_custom_call.1} parent=1 // pred_fallthru
      _
    // Predicated region
    $region26: #{tpu_custom_call.1} parent=1 // pred_check
      _
    $region27: #{tpu_custom_call.1} parent=1 // pred_check_branch
      %111 = sbr.rel (0) target = $region29
    $region28: #{tpu_custom_call.1} parent=1 // pred_region
      %113 = vsyncadd [#allocation5], 0
      %s114 = sshll.u32 [#allocation8], 4
      %s115 = int_to_ptr.vmem [resolvable:$true] %s114
      %s116 = sshll.u32 %s2, 4
      %s117 = int_to_ptr.hbm [resolvable:$true] %s116
      %122 = dma.vmem_to_hbm [thread:$0]  %s115, 128, %s117, [#allocation5], 64, 64, 4
    $region29: #{tpu_custom_call.1} parent=1 // pred_fallthru
      _
    // Predicated region
    $region30: #{tpu_custom_call.1} parent=1 // pred_check
      _
    $region31: #{tpu_custom_call.1} parent=1 // pred_check_branch
      %124 = sbr.rel (0) target = $region33
    $region32: #{tpu_custom_call.1} parent=1 // pred_region
      %126 = dma.done [#allocation5], 128
    $region33: #{tpu_custom_call.1} parent=1 // pred_fallthru
      _
    %127 = vsyncpa [#allocation4], 1
    %128 = vsyncpa [#allocation7], 1
    %129 = vsyncpa [#allocation5], 1

</llo_original>
